<compile_context>
chip_gen: v5e
topology: v5e:2x2
jax: 0.10.0
libtpu: 0.0.40
codegen_flags: <defaults>
</compile_context>

<pallas_src>
from copy import copy

import jax
import jax.numpy as jnp
from jax.experimental import pallas as pl
from jax.experimental.pallas import tpu as pltpu


# ----------------------------------------------------------------------------
# Pallas kernel: the device-side body of BaseModel.forward for a checked tensor.
# BaseModel itself adds no arithmetic (child `_forward` is abstract), so the
# faithful kernel is an exact element-wise pass-through of the batched tensor.
# ----------------------------------------------------------------------------
def _forward_passthrough_kernel(x_ref, o_ref):
    o_ref[...] = x_ref[...]


# ----------------------------------------------------------------------------
# Tiling helpers
# ----------------------------------------------------------------------------
_SMALL_TENSOR_BYTES = 1 << 20      # below this, skip the kernel entirely
_MEGACORE_SPLIT_BYTES = 4 << 20    # above this, force >= 2 grid steps (v7x)


def _vmem_capacity_bytes():
    """Physical VMEM of the current chip generation (fallback: 128 MiB)."""
    try:
        return int(pltpu.get_tpu_info().vmem_capacity_bytes)
    except Exception:
        return 128 << 20


def _block_target_bytes(vmem_bytes):
    """Generation-aware target block size.

    v7x (64 MiB VMEM/TC): ~6 MiB blocks -> 2 arrays x 2 buffers ~= 24 MiB.
    v5e/v6e (128 MiB VMEM): ~12 MiB blocks (measured copy roofline fraction
    keeps improving with larger tiles; fewer grid steps = less fixed overhead).
    """
    if vmem_bytes <= (64 << 20):
        return 6 << 20
    return 12 << 20


def _sublane_multiple(itemsize):
    """Packed-row granularity: 8 for f32, 16 for bf16, 32 for int8/fp8."""
    return max(8, 32 // max(int(itemsize), 1))


def _round_up(x, m):
    return ((x + m - 1) // m) * m


def _lane_dense_view(total, rows, cols, itemsize, block_target):
    """Prefer a (rows, cols) view whose lane dim is a multiple of 128."""
    if cols % 128 == 0 or total % 128 != 0:
        return rows, cols
    sub = _sublane_multiple(itemsize)
    lanes = 128
    # widen the lane dim as long as it divides the tensor and a minimal
    # (sub x lanes) block still fits comfortably inside the target.
    while (total % (lanes * 2) == 0
           and (lanes * 2) * itemsize * sub <= block_target
           and lanes * 2 <= total):
        lanes *= 2
    return total // lanes, lanes


def _choose_tiles(rows, cols, itemsize, block_target):
    """Pick (tm, tn) so one block is <= ~block_target and layout-aligned.

    Keeps the full column extent (lane-dense, unmasked stores) whenever the
    row axis alone can reach the target; otherwise tiles columns in multiples
    of 128 lanes so huge rows can never exceed VMEM.
    """
    sub = _sublane_multiple(itemsize)

    # Whole tensor fits in one block.
    if rows * cols * itemsize <= block_target:
        return rows, cols

    # Row-only tiling with the full column extent.
    row_bytes = cols * itemsize
    tm = (block_target // row_bytes) // sub * sub
    if tm >= sub:
        return int(min(tm, rows)), cols

    # One packed-row group already exceeds the target: tile columns too.
    tm = int(min(sub, rows))
    tn = (block_target // (tm * itemsize)) // 128 * 128
    tn = int(max(128, min(tn, cols)))
    return tm, tn


# ----------------------------------------------------------------------------
# Device pass-through wrapper
# ----------------------------------------------------------------------------
def _pallas_forward_tensor(x, force_kernel=False):
    """Run one batched data tensor through the Pallas forward kernel.

    BaseModel adds no arithmetic, so the kernel is an identity copy.  For
    small tensors (or when not forced) we return the input directly — strictly
    faster and numerically identical (the single biggest win per the review).
    """
    orig_shape = x.shape
    orig_dtype = x.dtype
    itemsize = jnp.dtype(orig_dtype).itemsize

    total = 1
    for d in orig_shape:
        total *= int(d)
    total_bytes = total * itemsize

    # Short-circuit: identity needs no device op at all.
    if total < 1024 or (not force_kernel and total_bytes < _SMALL_TENSOR_BYTES):
        return x

    # ---- 2-D (rows, lanes) view, lane dim as wide / 128-dense as possible ----
    if x.ndim >= 3:
        lead = 1
        for d in orig_shape[:-2]:
            lead *= int(d)
        rows, cols = lead, int(orig_shape[-2]) * int(orig_shape[-1])
    elif x.ndim == 2:
        rows, cols = int(orig_shape[0]), int(orig_shape[1])
    else:
        rows, cols = 1, total

    vmem_bytes = _vmem_capacity_bytes()
    block_target = _block_target_bytes(vmem_bytes)
    sub = _sublane_multiple(itemsize)

    rows, cols = _lane_dense_view(total, rows, cols, itemsize, block_target)
    x2d = x.reshape(rows, cols)

    tm, tn = _choose_tiles(rows, cols, itemsize, block_target)

    # Megacore (v7x) benefit needs >= 2 grid steps; split the tile if the whole
    # tensor would otherwise be a single block but is still several MiB.
    if (total_bytes >= _MEGACORE_SPLIT_BYTES
            and pl.cdiv(rows, tm) * pl.cdiv(cols, tn) == 1):
        if rows >= 2 * sub:
            tm = int(min(rows, _round_up(pl.cdiv(rows, 2), sub)))
        elif cols >= 256:
            tn = int(min(cols, _round_up(pl.cdiv(cols, 2), 128)))

    grid = (pl.cdiv(rows, tm), pl.cdiv(cols, tn))
    block_bytes = tm * tn * itemsize

    # Double-buffered in + out blocks (4x block) plus headroom, capped per
    # generation: <= ~48 MiB on v7x (64 MiB/TC), <= ~64 MiB on v5e/v6e.
    cap = 48 << 20 if vmem_bytes <= (64 << 20) else 64 << 20
    vmem_limit = int(min(cap, max(6 * block_bytes, 8 << 20)))

    out = pl.pallas_call(
        _forward_passthrough_kernel,
        out_shape=jax.ShapeDtypeStruct((rows, cols), orig_dtype),
        grid=grid,
        in_specs=[pl.BlockSpec((tm, tn), lambda i, j: (i, j))],
        out_specs=pl.BlockSpec((tm, tn), lambda i, j: (i, j)),
        # Output shares the input HBM buffer: XLA may donate/elide the copy.
        # (Value-safe because the kernel writes identical values.)
        input_output_aliases={0: 0},
        compiler_params=pltpu.CompilerParams(
            dimension_semantics=("parallel", "parallel"),
            vmem_limit_bytes=vmem_limit,
        ),
        cost_estimate=pl.CostEstimate(
            flops=0,
            transcendentals=0,
            bytes_accessed=2 * total_bytes,
        ),
    )(x2d)
    return out.reshape(orig_shape)


# ----------------------------------------------------------------------------
# BaseModel framework (JAX version)
# ----------------------------------------------------------------------------
class BaseModelJax:
    """JAX analog of siclib BaseModel.

    Children declare: default_conf, required_data_keys, _init, _forward,
    loss, metrics.
    """

    base_default_conf = {
        "name": None,
        "trainable": True,
        "freeze_batch_normalization": False,
        "timeit": False,
        "watch": False,
    }
    default_conf = {}
    required_data_keys = []
    strict_conf = False

    def __init__(self, conf=None):
        conf = dict(conf or {})
        # Merge: base defaults <- child defaults <- user conf (OmegaConf analog)
        merged = dict(self.base_default_conf)
        merged.update(self.default_conf)
        # 'pad' relocation logic from BaseModel.__init__
        if "pad" in conf and "pad" not in merged:
            conf["interpolation"] = {"pad": conf.pop("pad")}
        merged.update(conf)
        self.conf = merged
        self.required_data_keys = copy(self.required_data_keys)
        self.params = {}
        self._init(self.conf)
        # TODO(synk): checkpoint loading (flexible_load), wandb.watch, BatchNorm
        # freezing and OmegaConf struct/readonly flags are host-side framework
        # features with no tensor/kernel equivalent; omitted.
        if not self.conf["trainable"]:
            self.params = jax.tree_util.tree_map(jax.lax.stop_gradient, self.params)

    def forward(self, data):
        """Check the data and call the _forward method of the child model."""

        def recursive_key_check(expected, given):
            for key in expected:
                assert key in given, f"Missing key {key} in data: {list(given.keys())}"
                if isinstance(expected, dict):
                    recursive_key_check(expected[key], given[key])

        recursive_key_check(self.required_data_keys, data)
        return self._forward(data)

    __call__ = forward

    # --- abstract methods ---
    def _init(self, conf):
        raise NotImplementedError

    def _forward(self, data):
        raise NotImplementedError

    def loss(self, pred, data):
        raise NotImplementedError

    def metrics(self, pred, data):
        raise NotImplementedError


# ----------------------------------------------------------------------------
# Minimal concrete child, only to exercise the abstract base. Its _forward is
# the identity on the batched tensors (BaseModel adds no compute of its own);
# with force_pallas=True the pass-through runs on-device through the Pallas
# kernel, otherwise it is short-circuited (the fastest correct implementation).
# ----------------------------------------------------------------------------
class DemoModel(BaseModelJax):
    default_conf = {"name": "demo", "force_pallas": False}
    required_data_keys = ["image"]

    def _init(self, conf):
        # BaseModel.__init__ creates no parameters; nothing to initialize.
        self.params = {}

    def _forward(self, data):
        img = data["image"]
        out = _pallas_forward_tensor(img, force_kernel=self.conf.get("force_pallas", False))
        return {"image": out}

    def loss(self, pred, data):
        # Batch of scalars of shape (B,), key 'total' — per BaseModel contract.
        diff = pred["image"] - data["image"]
        per_sample = jnp.mean(diff.astype(jnp.float32) ** 2, axis=(1, 2, 3))
        return {"total": per_sample}


if __name__ == "__main__":
    key = jax.random.PRNGKey(0)
    B, C, H, W = 2, 4, 16, 16  # layout: NCHW, matching PyTorch conv convention
    image = jax.random.normal(key, (B, C, H, W), dtype=jnp.float32)

    # force_pallas=True so the Pallas pass-through kernel is actually exercised
    # once on this (small) demo tensor; production use would leave it False and
    # take the short-circuit path.
    model = DemoModel({"trainable": True, "force_pallas": True})
    pred = model({"image": image})
    out = jax.block_until_ready(pred["image"])

    assert out.shape == (B, C, H, W)
    assert out.dtype == image.dtype
    assert bool(jnp.allclose(out, image)), "forward pass-through mismatch"

    # Short-circuit path (default config): identical result, no device op.
    fast_model = DemoModel({"trainable": True})
    fast_out = jax.block_until_ready(fast_model({"image": image})["image"])
    assert bool(jnp.allclose(fast_out, image))

    losses = model.loss(pred, {"image": image})
    jax.block_until_ready(losses["total"])
    assert losses["total"].shape == (B,)

    print("KERNEL_OK")
</pallas_src>

<mosaic_0001>
module attributes {stable_mosaic.version = 11 : i64} {
  func.func @_forward_passthrough_kernel(%arg0: i32, %arg1: i32, %arg2: memref<8x256xf32, #tpu.memory_space<vmem>>, %arg3: memref<8x256xf32, #tpu.memory_space<vmem>>) attributes {dimension_semantics = [#tpu.dimension_semantics<parallel>, #tpu.dimension_semantics<parallel>], iteration_bounds = array<i64: 1, 1>, scalar_prefetch = 0 : i64, scratch_operands = 0 : i64, tpu.core_type = #tpu.core_type<tc>, window_params = [{transform_indices = @transform_0, window_bounds = array<i64: 8, 256>}, {transform_indices = @transform_1, window_bounds = array<i64: 8, 256>}]} {
    %c0 = arith.constant 0 : index
    %c0_0 = arith.constant 0 : index
    %0 = vector.load %arg2[%c0, %c0_0] : memref<8x256xf32, #tpu.memory_space<vmem>>, vector<8x256xf32>
    %c0_1 = arith.constant 0 : index
    %c0_2 = arith.constant 0 : index
    %1 = vector.load %arg3[%c0_1, %c0_2] : memref<8x256xf32, #tpu.memory_space<vmem>>, vector<8x256xf32>
    tpu.vector_store %arg3[%c0_1, %c0_2], %0 {strides = array<i32>} : memref<8x256xf32, #tpu.memory_space<vmem>>, vector<8x256xf32>,
    return
  }
  func.func @transform_0(%arg0: i32, %arg1: i32) -> (i32, i32) {
    %c0_i32 = arith.constant 0 : i32
    return %arg0, %arg1 : i32, i32
  }
  func.func @transform_1(%arg0: i32, %arg1: i32) -> (i32, i32) {
    %c0_i32 = arith.constant 0 : i32
    return %arg0, %arg1 : i32, i32
  }
}

</mosaic_0001>

<llo_original>
// kernel: tpu_custom_call.1
$region0: #{tpu_custom_call.1}
  #allocation0 [shape = 'u32[]', space=smem, size = 0x4, offset = 0x4, fixed_abs, tag = 'smem constant byte address 0x4 - core index']
  #allocation1 [shape = 'u32[72,128]{1,0:T(1,128)}', space=vmem, size = 0x9000, scoped, tag = 'internal scratch']
  %s0 = inlined_call_operand.hbm [shape: f32[8,256], index: 0, kind: input, shape index: {}, may-alias: {0,1}]
  %s1 = inlined_call_operand.hbm [shape: f32[8,256], index: 1, kind: output, shape index: {}, may-alias: {0,1}]
  %s2 = sld [smem:[#allocation0]]
  $region18: #{tpu_custom_call.1} parent=0
    _
  %s4 = ssub.s32 1, %s2
  %s5 = scalar_select 0, %s4, %s2
  $region1: #{tpu_custom_call.1} parent=0
    #allocation2 [shape = 'u8[8192]{0}', space=vmem, size = 0x2000, scoped, tag = 'input window, operand 0, single buffered']
    #allocation3 [shape = 's32[1]{0}', space=sflag, size = 0x4, scoped, tag = 'scoped memory for tpu_custom_call.1']
    #allocation4 [shape = 's32[1]{0}', space=sflag, size = 0x4, scoped, tag = 'scoped memory for tpu_custom_call.1']
    #allocation5 [shape = 'u8[8192]{0}', space=vmem, size = 0x2000, scoped, tag = 'output window, operand 0, single buffered']
    %6 = vsyncpa [#allocation3], 0
    %7 = vsyncpa [#allocation4], 0
    // Predicated region
    $region2: #{tpu_custom_call.1} parent=1 // pred_check
      _
    $region3: #{tpu_custom_call.1} parent=1 // pred_check_branch
      %9 = sbr.rel (0) target = $region5
    $region4: #{tpu_custom_call.1} parent=1 // pred_region
      %11 = vsyncadd [#allocation3], 0
      %s13 = sshll.u32 %s0, 4
      %s14 = int_to_ptr.hbm [resolvable:$true] %s13
      %s15 = sshll.u32 [#allocation2], 4
      %s16 = int_to_ptr.vmem [resolvable:$true] %s15
      %18 = dma.hbm_to_vmem [thread:$0]  %s14, 256, %s16, [#allocation3]
    $region5: #{tpu_custom_call.1} parent=1 // pred_fallthru
      _
    // Predicated region
    $region6: #{tpu_custom_call.1} parent=1 // pred_check
      _
    $region7: #{tpu_custom_call.1} parent=1 // pred_check_branch
      %20 = sbr.rel (0) target = $region9
    $region8: #{tpu_custom_call.1} parent=1 // pred_region
      %22 = dma.done [#allocation3], 256
    $region9: #{tpu_custom_call.1} parent=1 // pred_fallthru
      _
    %v23 = vld [vmem:[#allocation2] sm:$0xff]
    %v24 = vld [vmem:[#allocation2 + $0x8] sm:$0xff]
    %25 = vst [vmem:[#allocation5] sm:$0xff] %v23
    %26 = vst [vmem:[#allocation5 + $0x8] sm:$0xff] %v24
    // Predicated region
    $region10: #{tpu_custom_call.1} parent=1 // pred_check
      _
    $region11: #{tpu_custom_call.1} parent=1 // pred_check_branch
      %28 = sbr.rel (0) target = $region13
    $region12: #{tpu_custom_call.1} parent=1 // pred_region
      %30 = vsyncadd [#allocation4], 0
      %s32 = sshll.u32 [#allocation5], 4
      %s33 = int_to_ptr.vmem [resolvable:$true] %s32
      %s34 = sshll.u32 %s1, 4
      %s35 = int_to_ptr.hbm [resolvable:$true] %s34
      %37 = dma.vmem_to_hbm [thread:$0]  %s33, 256, %s35, [#allocation4]
    $region13: #{tpu_custom_call.1} parent=1 // pred_fallthru
      _
    // Predicated region
    $region14: #{tpu_custom_call.1} parent=1 // pred_check
      _
    $region15: #{tpu_custom_call.1} parent=1 // pred_check_branch
      %39 = sbr.rel (0) target = $region17
    $region16: #{tpu_custom_call.1} parent=1 // pred_region
      %41 = dma.done [#allocation4], 256
    $region17: #{tpu_custom_call.1} parent=1 // pred_fallthru
      _
    %42 = vsyncpa [#allocation3], 1
    %43 = vsyncpa [#allocation4], 1

</llo_original>
